<compile_context>
chip_gen: v7x
topology: tpu7x:2x2x1
jax: 0.10.0
libtpu: 0.0.40
codegen_flags: <defaults>
</compile_context>

<pallas_src>
import jax
import jax.numpy as jnp
from jax import lax
from jax.experimental import pallas as pl
from jax.experimental.pallas import tpu as pltpu


def _matching_kernel(text_ref, vid_ref, w_ref, b_ref, tem_ref, loss_ref):
    text = text_ref[...].astype(jnp.float32)   # (N, Dt)
    vid = vid_ref[...].astype(jnp.float32)     # (N, Dv)
    w = w_ref[...].astype(jnp.float32)         # (Dv, Dt)
    b = b_ref[...].astype(jnp.float32)         # (1, Dt)

    # v_proj: nn.Linear(Dv, Dt)  ->  vid @ W^T + b  (W already transposed here)
    v = jnp.dot(vid, w, preferred_element_type=jnp.float32) + b  # (N, Dt)

    # F.normalize(x, dim=-1) via rsqrt on the squared norm (EUP path).
    eps2 = jnp.float32(1e-24)                  # == (1e-12)^2
    t_ss = jnp.sum(text * text, axis=-1, keepdims=True)   # (N, 1)
    v_ss = jnp.sum(v * v, axis=-1, keepdims=True)          # (N, 1)

    # Fold 1/tem (scalar-path reciprocal) into the text row scale so the
    # temperature costs nothing on the (N, N) logits tile.
    inv_tem = 1.0 / tem_ref[0]
    t_scaled = text * (lax.rsqrt(jnp.maximum(t_ss, eps2)) * inv_tem)  # (N, Dt)
    v_n = v * lax.rsqrt(jnp.maximum(v_ss, eps2))                      # (N, Dt)

    # logits[i, j] = <t_n[i], v_n[j]> / tem, contracting the last dim of both
    # operands directly on the MXU (no materialized transpose of v_n).
    logits = lax.dot_general(
        t_scaled, v_n,
        dimension_numbers=(((1,), (1,)), ((), ())),
        preferred_element_type=jnp.float32)    # (N, N)

    n = logits.shape[0]
    row = lax.broadcasted_iota(jnp.int32, (n, n), 0)
    col = lax.broadcasted_iota(jnp.int32, (n, n), 1)
    is_diag = row == col
    # Diagonal values are identical whether gathered row-wise or column-wise;
    # extract once (lane-axis reduce) and reuse the mean for both directions.
    diag = jnp.sum(jnp.where(is_diag, logits, 0.0), axis=-1, keepdims=True)  # (N, 1)
    mean_diag = jnp.mean(diag)

    # text -> video cross-entropy (row-wise softmax, labels = arange(N))
    m_r = jnp.max(logits, axis=-1, keepdims=True)
    lse_r = m_r + jnp.log(jnp.sum(jnp.exp(logits - m_r), axis=-1, keepdims=True))
    loss_t2v = jnp.mean(lse_r) - mean_diag

    # video -> text cross-entropy (column-wise softmax == rows of logits.T)
    m_c = jnp.max(logits, axis=0, keepdims=True)
    lse_c = m_c + jnp.log(jnp.sum(jnp.exp(logits - m_c), axis=0, keepdims=True))
    loss_v2t = jnp.mean(lse_c) - mean_diag

    loss_ref[0, 0] = 0.5 * (loss_t2v + loss_v2t)


def matching_forward(text_feat, vid_feat, w_proj, b_proj, tem):
    """Full-array single-block Pallas call (shapes are small)."""
    tem_arr = jnp.asarray([tem], dtype=jnp.float32)
    b2d = b_proj.reshape(1, -1)
    out = pl.pallas_call(
        _matching_kernel,
        out_shape=jax.ShapeDtypeStruct((1, 1), jnp.float32),
        in_specs=[
            pl.BlockSpec(memory_space=pltpu.VMEM),   # text_feat
            pl.BlockSpec(memory_space=pltpu.VMEM),   # vid_feat
            pl.BlockSpec(memory_space=pltpu.VMEM),   # w_proj
            pl.BlockSpec(memory_space=pltpu.VMEM),   # b_proj
            pl.BlockSpec(memory_space=pltpu.SMEM),   # tem scalar
        ],
        out_specs=pl.BlockSpec(memory_space=pltpu.SMEM),
    )(text_feat, vid_feat, w_proj, b2d, tem_arr)
    return out[0, 0]


if __name__ == "__main__":
    # vt_shape = (Dv, Dt) with Dv != Dt so v_proj is active.
    N, Dv, Dt = 8, 48, 32
    key = jax.random.PRNGKey(0)
    k_t, k_v, k_w, k_b = jax.random.split(key, 4)

    text_feat = jax.random.normal(k_t, (N, Dt), dtype=jnp.float32)
    vid_feat = jax.random.normal(k_v, (N, Dv), dtype=jnp.float32)

    # Deterministic nn.Linear(Dv, Dt)-style init: U(-1/sqrt(Dv), 1/sqrt(Dv)).
    bound = 1.0 / jnp.sqrt(jnp.float32(Dv))
    w_proj = jax.random.uniform(k_w, (Dv, Dt), dtype=jnp.float32,
                                minval=-bound, maxval=bound)
    b_proj = jax.random.uniform(k_b, (Dt,), dtype=jnp.float32,
                                minval=-bound, maxval=bound)
    tem = 0.07  # loss_tem default (CLIP temperature)

    loss = matching_forward(text_feat, vid_feat, w_proj, b_proj, tem)
    jax.block_until_ready(loss)

    # Pure-JAX reference for sanity.
    v = vid_feat @ w_proj + b_proj
    t_n = text_feat / jnp.maximum(
        jnp.linalg.norm(text_feat, axis=-1, keepdims=True), 1e-12)
    v_n = v / jnp.maximum(jnp.linalg.norm(v, axis=-1, keepdims=True), 1e-12)
    logits = (t_n @ v_n.T) / tem
    labels = jnp.arange(N)
    lse_r = jax.scipy.special.logsumexp(logits, axis=-1)
    lse_c = jax.scipy.special.logsumexp(logits, axis=0)
    diag = logits[labels, labels]
    ref = 0.5 * (jnp.mean(lse_r - diag) + jnp.mean(lse_c - diag))
    assert jnp.allclose(loss, ref, rtol=1e-5, atol=1e-5), (loss, ref)

    print("KERNEL_OK")
</pallas_src>

<mosaic_0001>
module attributes {stable_mosaic.version = 11 : i64} {
  func.func @_matching_kernel(%arg0: memref<8x32xf32, #tpu.memory_space<vmem>>, %arg1: memref<8x48xf32, #tpu.memory_space<vmem>>, %arg2: memref<48x32xf32, #tpu.memory_space<vmem>>, %arg3: memref<1x32xf32, #tpu.memory_space<vmem>>, %arg4: memref<1xf32, #tpu.memory_space<smem>>, %arg5: memref<1x1xf32, #tpu.memory_space<smem>>) attributes {dimension_semantics = [], scalar_prefetch = 0 : i64, scratch_operands = 0 : i64, tpu.core_type = #tpu.core_type<tc>} {
    %c0 = arith.constant 0 : index
    %c0_0 = arith.constant 0 : index
    %0 = vector.load %arg0[%c0, %c0_0] : memref<8x32xf32, #tpu.memory_space<vmem>>, vector<8x32xf32>
    %c0_1 = arith.constant 0 : index
    %c0_2 = arith.constant 0 : index
    %1 = vector.load %arg1[%c0_1, %c0_2] : memref<8x48xf32, #tpu.memory_space<vmem>>, vector<8x48xf32>
    %c0_3 = arith.constant 0 : index
    %c0_4 = arith.constant 0 : index
    %2 = vector.load %arg2[%c0_3, %c0_4] : memref<48x32xf32, #tpu.memory_space<vmem>>, vector<48x32xf32>
    %c0_5 = arith.constant 0 : index
    %c0_6 = arith.constant 0 : index
    %3 = vector.load %arg3[%c0_5, %c0_6] : memref<1x32xf32, #tpu.memory_space<vmem>>, vector<1x32xf32>
    %cst = arith.constant dense<0.000000e+00> : vector<8x32xf32>
    %4 = tpu.matmul %1, %2, %cst {dimension_numbers = #tpu.dot_dimension_numbers<[1], [0], [0], [1], [0, 0, 1, 1], [], []>} : vector<8x48xf32>, vector<48x32xf32>, vector<8x32xf32> -> vector<8x32xf32>
    %5 = vector.broadcast %3 : vector<1x32xf32> to vector<8x32xf32>
    %6 = arith.addf %4, %5 : vector<8x32xf32>
    %7 = arith.mulf %0, %0 : vector<8x32xf32>
    %cst_7 = arith.constant dense<0.000000e+00> : vector<8xf32>
    %8 = vector.multi_reduction <add>, %7, %cst_7 [1] : vector<8x32xf32> to vector<8xf32>
    %9 = vector.shape_cast %8 : vector<8xf32> to vector<8x1xf32>
    %10 = arith.mulf %6, %6 : vector<8x32xf32>
    %cst_8 = arith.constant dense<0.000000e+00> : vector<8xf32>
    %11 = vector.multi_reduction <add>, %10, %cst_8 [1] : vector<8x32xf32> to vector<8xf32>
    %12 = vector.shape_cast %11 : vector<8xf32> to vector<8x1xf32>
    %c0_9 = arith.constant 0 : index
    %13 = memref.load %arg4[%c0_9] : memref<1xf32, #tpu.memory_space<smem>>
    %cst_10 = arith.constant 1.000000e+00 : f32
    %14 = arith.divf %cst_10, %13 : f32
    %cst_11 = arith.constant 1.000000e-24 : f32
    %15 = vector.broadcast %cst_11 : f32 to vector<8x1xf32>
    %16 = arith.maximumf %9, %15 : vector<8x1xf32>
    %17 = math.rsqrt %16 : vector<8x1xf32>
    %18 = vector.broadcast %14 : f32 to vector<8x1xf32>
    %19 = arith.mulf %17, %18 : vector<8x1xf32>
    %20 = vector.broadcast %19 : vector<8x1xf32> to vector<8x32xf32>
    %21 = arith.mulf %0, %20 : vector<8x32xf32>
    %cst_12 = arith.constant 1.000000e-24 : f32
    %22 = vector.broadcast %cst_12 : f32 to vector<8x1xf32>
    %23 = arith.maximumf %12, %22 : vector<8x1xf32>
    %24 = math.rsqrt %23 : vector<8x1xf32>
    %25 = vector.broadcast %24 : vector<8x1xf32> to vector<8x32xf32>
    %26 = arith.mulf %6, %25 : vector<8x32xf32>
    %cst_13 = arith.constant dense<0.000000e+00> : vector<8x8xf32>
    %27 = tpu.matmul %21, %26, %cst_13 {dimension_numbers = #tpu.dot_dimension_numbers<[1], [1], [0], [0], [0, 0, 1, 0], [], []>} : vector<8x32xf32>, vector<8x32xf32>, vector<8x8xf32> -> vector<8x8xf32>
    %28 = tpu.iota {dimensions = array<i32: 0>} : vector<8x8xi32>
    %29 = tpu.iota {dimensions = array<i32: 1>} : vector<8x8xi32>
    %30 = arith.cmpi eq, %28, %29 : vector<8x8xi32>
    %cst_14 = arith.constant 0.000000e+00 : f32
    %31 = vector.broadcast %cst_14 : f32 to vector<8x8xf32>
    %32 = arith.select %30, %27, %31 : vector<8x8xi1>, vector<8x8xf32>
    %cst_15 = arith.constant dense<0.000000e+00> : vector<8xf32>
    %33 = vector.multi_reduction <add>, %32, %cst_15 [1] : vector<8x8xf32> to vector<8xf32>
    %34 = vector.shape_cast %33 : vector<8xf32> to vector<8x1xf32>
    %35 = vector.shape_cast %34 : vector<8x1xf32> to vector<1x8x1xf32>
    %cst_16 = arith.constant dense<0.000000e+00> : vector<1xf32>
    %36 = vector.multi_reduction <add>, %35, %cst_16 [1, 2] : vector<1x8x1xf32> to vector<1xf32>
    %37 = vector.shape_cast %36 : vector<1xf32> to vector<1x1x1xf32>
    %38 = vector.extract %37[0, 0, 0] : f32 from vector<1x1x1xf32>
    %cst_17 = arith.constant 8.000000e+00 : f32
    %39 = arith.divf %38, %cst_17 : f32
    %cst_18 = arith.constant dense<0xFF800000> : vector<8xf32>
    %40 = vector.multi_reduction <maximumf>, %27, %cst_18 [1] : vector<8x8xf32> to vector<8xf32>
    %41 = vector.shape_cast %40 : vector<8xf32> to vector<8x1xf32>
    %42 = vector.broadcast %41 : vector<8x1xf32> to vector<8x8xf32>
    %43 = arith.subf %27, %42 : vector<8x8xf32>
    %44 = math.exp %43 : vector<8x8xf32>
    %cst_19 = arith.constant dense<0.000000e+00> : vector<8xf32>
    %45 = vector.multi_reduction <add>, %44, %cst_19 [1] : vector<8x8xf32> to vector<8xf32>
    %46 = vector.shape_cast %45 : vector<8xf32> to vector<8x1xf32>
    %47 = math.log %46 : vector<8x1xf32>
    %48 = arith.addf %41, %47 : vector<8x1xf32>
    %49 = vector.shape_cast %48 : vector<8x1xf32> to vector<1x8x1xf32>
    %cst_20 = arith.constant dense<0.000000e+00> : vector<1xf32>
    %50 = vector.multi_reduction <add>, %49, %cst_20 [1, 2] : vector<1x8x1xf32> to vector<1xf32>
    %51 = vector.shape_cast %50 : vector<1xf32> to vector<1x1x1xf32>
    %52 = vector.extract %51[0, 0, 0] : f32 from vector<1x1x1xf32>
    %cst_21 = arith.constant 8.000000e+00 : f32
    %53 = arith.divf %52, %cst_21 : f32
    %54 = arith.subf %53, %39 : f32
    %cst_22 = arith.constant dense<0xFF800000> : vector<8xf32>
    %55 = vector.multi_reduction <maximumf>, %27, %cst_22 [0] : vector<8x8xf32> to vector<8xf32>
    %56 = vector.shape_cast %55 : vector<8xf32> to vector<1x8xf32>
    %57 = vector.broadcast %56 : vector<1x8xf32> to vector<8x8xf32>
    %58 = arith.subf %27, %57 : vector<8x8xf32>
    %59 = math.exp %58 : vector<8x8xf32>
    %cst_23 = arith.constant dense<0.000000e+00> : vector<8xf32>
    %60 = vector.multi_reduction <add>, %59, %cst_23 [0] : vector<8x8xf32> to vector<8xf32>
    %61 = vector.shape_cast %60 : vector<8xf32> to vector<1x8xf32>
    %62 = math.log %61 : vector<1x8xf32>
    %63 = arith.addf %56, %62 : vector<1x8xf32>
    %64 = vector.shape_cast %63 : vector<1x8xf32> to vector<1x1x8xf32>
    %cst_24 = arith.constant dense<0.000000e+00> : vector<1xf32>
    %65 = vector.multi_reduction <add>, %64, %cst_24 [1, 2] : vector<1x1x8xf32> to vector<1xf32>
    %66 = vector.shape_cast %65 : vector<1xf32> to vector<1x1x1xf32>
    %67 = vector.extract %66[0, 0, 0] : f32 from vector<1x1x1xf32>
    %cst_25 = arith.constant 8.000000e+00 : f32
    %68 = arith.divf %67, %cst_25 : f32
    %69 = arith.subf %68, %39 : f32
    %70 = arith.addf %54, %69 : f32
    %cst_26 = arith.constant 5.000000e-01 : f32
    %71 = arith.mulf %cst_26, %70 : f32
    %c0_27 = arith.constant 0 : index
    %c0_28 = arith.constant 0 : index
    %72 = memref.load %arg5[%c0_27, %c0_28] : memref<1x1xf32, #tpu.memory_space<smem>>
    memref.store %71, %arg5[%c0_27, %c0_28] : memref<1x1xf32, #tpu.memory_space<smem>>
    return
  }
}

</mosaic_0001>

<llo_original>
// kernel: tpu_custom_call.1
$region0: #{tpu_custom_call.1}
  #allocation0 [shape = 'u32[]', space=smem, size = 0x4, offset = 0x4, fixed_abs, tag = 'smem constant byte address 0x4 - core index']
  #allocation1 [shape = 'u32[144,128]{1,0:T(1,128)}', space=vmem, size = 0x12000, scoped, tag = 'internal scratch']
  #allocation2 [shape = 'f32[1]{0:T(128)S(6)}', space=smem, size = 0x200, scoped, tag = 'scoped memory for tpu_custom_call.1']
  %s0 = inlined_call_operand.vmem [shape: f32[8,32], index: 0, kind: input, shape index: {}]
  %s1 = inlined_call_operand.vmem [shape: f32[8,48], index: 1, kind: input, shape index: {}]
  %s2 = inlined_call_operand.vmem [shape: f32[48,32], index: 2, kind: input, shape index: {}]
  %s3 = inlined_call_operand.vmem [shape: f32[1,32], index: 3, kind: input, shape index: {}]
  %s4 = inlined_call_operand.<no memory space> [shape: f32[1], index: 4, kind: input, shape index: {}]
  %s5 = inlined_call_operand.hbm [shape: f32[1,1], index: 5, kind: output, shape index: {}]
  %s6 = sld [smem:[#allocation0]]
  $region30: #{tpu_custom_call.1} parent=0
    _
  %s8 = ssub.s32 1, %s6
  %s9 = scalar_select 0, %s8, %s6
  %10 = sst [smem:[#allocation2]] %s4
  $region1: #{tpu_custom_call.1} parent=0
    #allocation3 [shape = 'u8[512]{0}', space=smem, size = 0x200, scoped, tag = 'output window, operand 0, single buffered']
    #allocation4 [shape = 's32[1]{0}', space=sflag, size = 0x4, scoped, tag = 'scoped memory for tpu_custom_call.1']
    %11 = vsyncpa [#allocation4], 0
    // Predicated region
    $region2: #{tpu_custom_call.1} parent=1 // pred_check
      _
    $region3: #{tpu_custom_call.1} parent=1 // pred_check_branch
      %13 = sbr.rel (0) target = $region5
    $region4: #{tpu_custom_call.1} parent=1 // pred_region
      _
    $region5: #{tpu_custom_call.1} parent=1 // pred_fallthru
      _
    // Predicated region
    $region6: #{tpu_custom_call.1} parent=1 // pred_check
      _
    $region7: #{tpu_custom_call.1} parent=1 // pred_check_branch
      %15 = sbr.rel (0) target = $region9
    $region8: #{tpu_custom_call.1} parent=1 // pred_region
      _
    $region9: #{tpu_custom_call.1} parent=1 // pred_fallthru
      _
    // Predicated region
    $region10: #{tpu_custom_call.1} parent=1 // pred_check
      _
    $region11: #{tpu_custom_call.1} parent=1 // pred_check_branch
      %17 = sbr.rel (0) target = $region13
    $region12: #{tpu_custom_call.1} parent=1 // pred_region
      _
    $region13: #{tpu_custom_call.1} parent=1 // pred_fallthru
      _
    // Predicated region
    $region14: #{tpu_custom_call.1} parent=1 // pred_check
      _
    $region15: #{tpu_custom_call.1} parent=1 // pred_check_branch
      %19 = sbr.rel (0) target = $region17
    $region16: #{tpu_custom_call.1} parent=1 // pred_region
      _
    $region17: #{tpu_custom_call.1} parent=1 // pred_fallthru
      _
    // Predicated region
    $region18: #{tpu_custom_call.1} parent=1 // pred_check
      _
    $region19: #{tpu_custom_call.1} parent=1 // pred_check_branch
      %21 = sbr.rel (0) target = $region21
    $region20: #{tpu_custom_call.1} parent=1 // pred_region
      _
    $region21: #{tpu_custom_call.1} parent=1 // pred_fallthru
      _
    %v22 = vld [vmem:[%s0] sm:$0xff]
    %v23 = vld [vmem:[%s1] sm:$0xff]
    %v24 = vld [vmem:[%s2] sm:$0xff]
    %v25 = vld [vmem:[%s2 + $0x8] sm:$0xff]
    %v26 = vld [vmem:[%s2 + $0x10] sm:$0xff]
    %v27 = vld [vmem:[%s2 + $0x18] sm:$0xff]
    %v28 = vld [vmem:[%s2 + $0x20] sm:$0xff]
    %v29 = vld [vmem:[%s2 + $0x28] sm:$0xff]
    %v30 = vld [vmem:[%s3] sm:$0x1]
    %v32 = vlaneseq
    %v33 = vshrl.u32 %v32, 7
    %v34 = vsub.s32 0, %v33
    %v35 = vrot.slane %v30, %v34
    %vm37 = vcmask 392192
    %v39 = vsel %vm37, %v23, 0
    %41 = vmatprep.subr.mxu0 0.0
    %42 = vmatpush1.msra.mxu0 %v24
    %43 = vmatprep.subr.mxu0 0.0
    %44 = vmatpush1.msra.mxu0 %v25
    %45 = vmatprep.subr.mxu0 0.0
    %46 = vmatpush1.msra.mxu0 %v26
    %47 = vmatprep.subr.mxu0 0.0
    %48 = vmatpush1.msra.mxu0 %v27
    %49 = vmatprep.subr.mxu0 0.0
    %50 = vmatpush1.msra.mxu0 %v28
    %51 = vmatprep.subr.mxu0 0.0
    %52 = vmatpush1.msra.mxu0 %v29
    %53 = vmatprep.subr.mxu0 0.0
    %54 = vmatpush1.msra.mxu0 0.0
    %55 = vmatprep.subr.mxu0 0.0
    %56 = vmatpush1.msra.mxu0 0.0
    %57 = vmatprep.subr.mxu0 0.0
    %58 = vmatpush1.msra.mxu0 0.0
    %59 = vmatprep.subr.mxu0 0.0
    %60 = vmatpush1.msra.mxu0 0.0
    %61 = vmatprep.subr.mxu0 0.0
    %62 = vmatpush1.msra.mxu0 0.0
    %63 = vmatprep.subr.mxu0 0.0
    %64 = vmatpush1.msra.mxu0 0.0
    %65 = vmatprep.subr.mxu0 0.0
    %66 = vmatpush1.msra.mxu0 0.0
    %67 = vmatprep.subr.mxu0 0.0
    %68 = vmatpush1.msra.mxu0 0.0
    %69 = vmatprep.subr.mxu0 0.0
    %70 = vmatpush1.msra.mxu0 0.0
    %71 = vmatprep.subr.mxu0 0.0
    %72 = vmatpush1.msra.mxu0 0.0
    %73 = vmatprep.subr.mxu0 0.0
    %74 = vmatpush1.msra.mxu0 0.0
    %75 = vmatprep.subr.mxu0 0.0
    %76 = vmatpush1.msra.mxu0 0.0
    %77 = vmatprep.subr.mxu0 0.0
    %78 = vmatpush1.msra.mxu0 0.0
    %79 = vmatprep.subr.mxu0 0.0
    %80 = vmatpush1.msra.mxu0 0.0
    %81 = vmatprep.subr.mxu0 0.0
    %82 = vmatpush1.msra.mxu0 0.0
    %83 = vmatprep.subr.mxu0 0.0
    %84 = vmatpush1.msra.mxu0 0.0
    %85 = vmatprep.subr.mxu0 0.0
    %86 = vmatpush1.msra.mxu0 0.0
    %87 = vmatprep.subr.mxu0 0.0
    %88 = vmatpush1.msra.mxu0 0.0
    %89 = vmatprep.subr.mxu0 0.0
    %90 = vmatpush1.msra.mxu0 0.0
    %91 = vmatprep.subr.mxu0 0.0
    %92 = vmatpush1.msra.mxu0 0.0
    %93 = vmatprep.subr.mxu0 0.0
    %94 = vmatpush1.msra.mxu0 0.0
    %95 = vmatprep.subr.mxu0 0.0
    %96 = vmatpush1.msra.mxu0 0.0
    %97 = vmatprep.subr.mxu0 0.0
    %98 = vmatpush1.msra.mxu0 0.0
    %99 = vmatprep.subr.mxu0 0.0
    %100 = vmatpush1.msra.mxu0 0.0
    %101 = vmatprep.subr.mxu0 0.0
    %102 = vmatpush1.msra.mxu0 0.0
    %103 = vmatprep.subr.mxu0 0.0
    %104 = vmatpush1.msra.mxu0 0.0
    %105 = vmatprep.mubr.f32.mxu0 0.0
    %106 = vmatmul.mubr.f32.gmra.mrb[0].mxu0 %v39
    %v107 = vpop.f32.mrb[0].mxu0
    %v108 = vadd.f32 %v35, %v107
    %v109 = vpop.f32.mrb[0].mxu0
    %110 = vdwg.mxu0
    %v111 = vmul.f32 %v22, %v22
    %vm112 = vcmask 261120
    %v113 = vsel %vm112, %v111, 0.0
    %114 = vadd.xlane.f32.xlu0 %v113
    %v115 = vpop.xlane.xlu0 %114
    %v116 = vmul.f32 %v108, %v108
    %v117 = vsel %vm112, %v116, 0.0
    %118 = vadd.xlane.f32.xlu0 %v117
    %v119 = vpop.xlane.xlu0 %118
    %s120 = sld [smem:[#allocation2]]
    %v121 = vstv %s120
    %v122 = vrcp.pop %v121
    %s123 = vtos %v122
    %v124 = vmax.f32 %v115, 1e-24
    %v125 = vrsqrt.pop %v124
    %v126 = vstv %s123
    %v127 = vmul.f32 %v125, %v126
    %v128 = vmul.f32 %v22, %v127
    %v129 = vmax.f32 %v119, 1e-24
    %v130 = vrsqrt.pop %v129
    %v131 = vmul.f32 %v108, %v130
    %v133 = vsel %vm112, %v128, 0
    %v136 = vsel %vm112, %v131, 0
    %138 = vmatprep.subr.mxu0 0.0
    %139 = vmatpush1.xpose.msra.mxu0 %v136
    %140 = vmatprep.subr.mxu0 0.0
    %141 = vmatpush1.xpose.msra.mxu0 0.0
    %142 = vmatprep.subr.mxu0 0.0
    %143 = vmatpush1.xpose.msra.mxu0 0.0
    %144 = vmatprep.subr.mxu0 0.0
    %145 = vmatpush1.xpose.msra.mxu0 0.0
    %146 = vmatprep.subr.mxu0 0.0
    %147 = vmatpush1.xpose.msra.mxu0 0.0
    %148 = vmatprep.subr.mxu0 0.0
    %149 = vmatpush1.xpose.msra.mxu0 0.0
    %150 = vmatprep.subr.mxu0 0.0
    %151 = vmatpush1.xpose.msra.mxu0 0.0
    %152 = vmatprep.subr.mxu0 0.0
    %153 = vmatpush1.xpose.msra.mxu0 0.0
    %154 = vmatprep.subr.mxu0 0.0
    %155 = vmatpush1.xpose.msra.mxu0 0.0
    %156 = vmatprep.subr.mxu0 0.0
    %157 = vmatpush1.xpose.msra.mxu0 0.0
    %158 = vmatprep.subr.mxu0 0.0
    %159 = vmatpush1.xpose.msra.mxu0 0.0
    %160 = vmatprep.subr.mxu0 0.0
    %161 = vmatpush1.xpose.msra.mxu0 0.0
    %162 = vmatprep.subr.mxu0 0.0
    %163 = vmatpush1.xpose.msra.mxu0 0.0
    %164 = vmatprep.subr.mxu0 0.0
    %165 = vmatpush1.xpose.msra.mxu0 0.0
    %166 = vmatprep.subr.mxu0 0.0
    %167 = vmatpush1.xpose.msra.mxu0 0.0
    %168 = vmatprep.subr.mxu0 0.0
    %169 = vmatpush1.xpose.msra.mxu0 0.0
    %170 = vmatprep.subr.mxu0 0.0
    %171 = vmatpush1.xpose.msra.mxu0 0.0
    %172 = vmatprep.subr.mxu0 0.0
    %173 = vmatpush1.xpose.msra.mxu0 0.0
    %174 = vmatprep.subr.mxu0 0.0
    %175 = vmatpush1.xpose.msra.mxu0 0.0
    %176 = vmatprep.subr.mxu0 0.0
    %177 = vmatpush1.xpose.msra.mxu0 0.0
    %178 = vmatprep.subr.mxu0 0.0
    %179 = vmatpush1.xpose.msra.mxu0 0.0
    %180 = vmatprep.subr.mxu0 0.0
    %181 = vmatpush1.xpose.msra.mxu0 0.0
    %182 = vmatprep.subr.mxu0 0.0
    %183 = vmatpush1.xpose.msra.mxu0 0.0
    %184 = vmatprep.subr.mxu0 0.0
    %185 = vmatpush1.xpose.msra.mxu0 0.0
    %186 = vmatprep.subr.mxu0 0.0
    %187 = vmatpush1.xpose.msra.mxu0 0.0
    %188 = vmatprep.subr.mxu0 0.0
    %189 = vmatpush1.xpose.msra.mxu0 0.0
    %190 = vmatprep.subr.mxu0 0.0
    %191 = vmatpush1.xpose.msra.mxu0 0.0
    %192 = vmatprep.subr.mxu0 0.0
    %193 = vmatpush1.xpose.msra.mxu0 0.0
    %194 = vmatprep.subr.mxu0 0.0
    %195 = vmatpush1.xpose.msra.mxu0 0.0
    %196 = vmatprep.subr.mxu0 0.0
    %197 = vmatpush1.xpose.msra.mxu0 0.0
    %198 = vmatprep.subr.mxu0 0.0
    %199 = vmatpush1.xpose.msra.mxu0 0.0
    %200 = vmatprep.subr.mxu0 0.0
    %201 = vmatpush1.xpose.msra.mxu0 0.0
    %202 = vmatprep.mubr.f32.mxu0 0.0
    %203 = vmatmul.mubr.f32.gmra.mrb[0].mxu0 %v133
    %v204 = vpop.f32.mrb[0].mxu0
    %v205 = vadd.f32 0.0, %v204
    %v206 = vpop.f32.mrb[0].mxu0
    %207 = vdwg.mxu0
    %v208 = vlaneseq
    %v209 = vshrl.u32 %v208, 7
    %v210 = vlaneseq
    %v211 = vand.u32 %v210, 127
    %vm212 = vcmp.eq.s32.totalorder %v209, %v211
    %v213 = vsel %vm212, %v205, 0.0
    %vm214 = vcmask 64512
    %v215 = vsel %vm214, %v213, 0.0
    %216 = vadd.xlane.f32.xlu0 %v215
    %v217 = vpop.xlane.xlu0 %216
    %vm218 = vcmask 7168
    %v219 = vsel %vm218, %v217, 0.0
    %220 = vadd.xlane.f32.xlu0 %v219
    %v221 = vpop.xlane.xlu0 %220
    %v222 = vrot.slane %v221, 4
    %v223 = vadd.f32 %v221, %v222
    %v224 = vrot.slane %v223, 2
    %v225 = vadd.f32 %v223, %v224
    %v226 = vrot.slane %v225, 1
    %v227 = vadd.f32 %v225, %v226
    %s228 = vtos %v227
    %v229 = vrcp.pop 8.0
    %s230 = vtos %v229
    %s231 = smul.f32 %s228, %s230
    %v232 = vsel %vm214, %v205, -inf
    %233 = vmax.xlane.f32.xlu0 %v232
    %v234 = vpop.xlane.xlu0 %233
    %v235 = vsub.f32 %v205, %v234
    %v236 = vmul.f32 %v235, 1.442695
    %v237 = vpow.pop %v236
    %v238 = vsel %vm214, %v237, 0.0
    %239 = vadd.xlane.f32.xlu0 %v238
    %v240 = vpop.xlane.xlu0 %239
    %v241 = vlog2.pop %v240
    %v242 = vmul.f32 %v241, 0.6931472
    %v243 = vadd.f32 %v234, %v242
    %v244 = vsel %vm218, %v243, 0.0
    %245 = vadd.xlane.f32.xlu0 %v244
    %v246 = vpop.xlane.xlu0 %245
    %v247 = vrot.slane %v246, 4
    %v248 = vadd.f32 %v246, %v247
    %v249 = vrot.slane %v248, 2
    %v250 = vadd.f32 %v248, %v249
    %v251 = vrot.slane %v250, 1
    %v252 = vadd.f32 %v250, %v251
    %s253 = vtos %v252
    %v254 = vrcp.pop 8.0
    %s255 = vtos %v254
    %s256 = smul.f32 %s253, %s255
    %s257 = ssub.f32 %s256, %s231
    %v258 = vrot.slane %v232, 4
    %v259 = vmax.f32 %v232, %v258
    %v260 = vrot.slane %v259, 2
    %v261 = vmax.f32 %v259, %v260
    %v262 = vrot.slane %v261, 1
    %v263 = vmax.f32 %v261, %v262
    %v264 = vsub.f32 %v205, %v263
    %v265 = vmul.f32 %v264, 1.442695
    %v266 = vpow.pop %v265
    %v267 = vsel %vm214, %v266, 0.0
    %v268 = vrot.slane %v267, 4
    %v269 = vadd.f32 %v267, %v268
    %v270 = vrot.slane %v269, 2
    %v271 = vadd.f32 %v269, %v270
    %v272 = vrot.slane %v271, 1
    %v273 = vadd.f32 %v271, %v272
    %v274 = vlog2.pop %v273
    %v275 = vmul.f32 %v274, 0.6931472
    %v276 = vadd.f32 %v263, %v275
    %vm277 = vcmask 57344
    %v278 = vsel %vm277, %v276, 0.0
    %279 = vadd.xlane.f32.xlu0 %v278
    %v280 = vpop.xlane.xlu0 %279
    %v281 = vrot.slane %v280, 4
    %v282 = vadd.f32 %v280, %v281
    %v283 = vrot.slane %v282, 2
    %v284 = vadd.f32 %v282, %v283
    %v285 = vrot.slane %v284, 1
    %v286 = vadd.f32 %v284, %v285
    %s287 = vtos %v286
    %v288 = vrcp.pop 8.0
    %s289 = vtos %v288
    %s290 = smul.f32 %s287, %s289
    %s291 = ssub.f32 %s290, %s231
    %s292 = sadd.f32 %s257, %s291
    %s293 = smul.f32 %s292, 0.5
    %s294 = scalar_lea.smem [#allocation3], 0
    %295 = sst [smem:[%s294]] %s293
    // Predicated region
    $region22: #{tpu_custom_call.1} parent=1 // pred_check
      _
    $region23: #{tpu_custom_call.1} parent=1 // pred_check_branch
      %297 = sbr.rel (0) target = $region25
    $region24: #{tpu_custom_call.1} parent=1 // pred_region
      %s299 = ssub.s32 16, 16
      %300 = vsyncadd [#allocation4], %s299
      %303 = dma.smem_to_hbm [#allocation3], 16, %s5, [#allocation4]
    $region25: #{tpu_custom_call.1} parent=1 // pred_fallthru
      _
    // Predicated region
    $region26: #{tpu_custom_call.1} parent=1 // pred_check
      _
    $region27: #{tpu_custom_call.1} parent=1 // pred_check_branch
      %305 = sbr.rel (0) target = $region29
    $region28: #{tpu_custom_call.1} parent=1 // pred_region
      %306 = dma.done [#allocation4], 16
    $region29: #{tpu_custom_call.1} parent=1 // pred_fallthru
      _
    %307 = sfence
    %308 = vsyncpa [#allocation4], 1

</llo_original>
